<compile_context>
chip_gen: v7x
topology: tpu7x:2x2x1
jax: 0.10.0
libtpu: 0.0.40
codegen_flags: <defaults>
</compile_context>

<pallas_src>
import jax
import jax.numpy as jnp
from jax.experimental import pallas as pl
from jax.experimental.pallas import tpu as pltpu


def _predict_kernel(y_ref, std_ref, mean_ref, o_ref):
    # inverse-normalize (out_normalizer.inverse_normalize) fused with relu
    # (_predict_flux).  (1, D) std/mean broadcast over the sublane (row) axis.
    y_raw = y_ref[...] * std_ref[...] + mean_ref[...]
    o_ref[...] = jnp.maximum(y_raw, 0.0).astype(o_ref.dtype)


def _tpu_vmem_capacity_bytes() -> int:
    try:
        return int(pltpu.get_tpu_info().vmem_capacity_bytes)
    except Exception:
        return 128 << 20  # v5e / v6e default


def _round_up(x: int, m: int) -> int:
    return ((x + m - 1) // m) * m


def base_model_predict(y_normed: jax.Array,
                       std: jax.Array,
                       mean: jax.Array,
                       *,
                       out_dtype=None,
                       target_tile_bytes: int = 8 << 20) -> jax.Array:
    """Equivalent of BaseModel.Y_to_raw for a standard-scaler out_normalizer:
       relu(y_normed * std + mean).

    y_normed : (B, D) float32
    std, mean: (1, D) float32
    Arbitrary B/D are supported without padding: partial row/lane blocks are
    handled by Pallas' masked loads/stores.
    """
    B, D = y_normed.shape
    in_itemsize = jnp.dtype(y_normed.dtype).itemsize
    out_dtype = jnp.dtype(y_normed.dtype) if out_dtype is None else jnp.dtype(out_dtype)
    out_itemsize = out_dtype.itemsize

    # ---- generation-aware VMEM budget ------------------------------------
    vmem_phys = _tpu_vmem_capacity_bytes()
    two_core = vmem_phys <= (64 << 20)                 # v7x-like: 2 TC, 64 MiB VMEM
    vmem_cap = (40 << 20) if two_core else (96 << 20)  # leave generous headroom

    # ---- tile sizing (memory-bound: biggest tile that is VMEM-safe) ------
    row_bytes_in = D * in_itemsize
    row_bytes_io = D * (in_itemsize + out_itemsize)
    # double-buffered in+out tiles + headroom must fit under the cap
    max_tile_rows = max(8, ((vmem_cap - (4 << 20)) // (2 * row_bytes_io)) // 8 * 8)
    rows_for_target = max(8, (target_tile_bytes // row_bytes_in) // 8 * 8)
    block_rows = int(min(rows_for_target, max_tile_rows))

    if block_rows >= B:
        block_rows = B  # full-dim block: exempt from sublane multiple-of-8 rule

    # ---- megacore balance (v7x-like only) --------------------------------
    if two_core:
        steps = pl.cdiv(B, block_rows)
        if steps == 1 and B >= 16:
            half = _round_up(pl.cdiv(B, 2), 8)
            if half < B:
                block_rows = half               # exactly 2 steps, one per TC
        elif steps > 1 and steps % 2 == 1:
            # nudge block_rows so the grid length is even (equal work per TC)
            for cand in (list(range(block_rows + 8, 2 * block_rows + 1, 8))
                         + list(range(block_rows - 8, 7, -8))):
                if cand <= max_tile_rows and pl.cdiv(B, cand) % 2 == 0:
                    block_rows = cand
                    break

    grid_len = pl.cdiv(B, block_rows)

    tile_vmem = block_rows * row_bytes_io
    param_vmem = 4 * D * in_itemsize  # std + mean (possibly double-buffered)
    vmem_limit = int(min(2 * tile_vmem + param_vmem + (4 << 20), vmem_cap))

    return pl.pallas_call(
        _predict_kernel,
        out_shape=jax.ShapeDtypeStruct((B, D), out_dtype),
        grid=(grid_len,),
        in_specs=[
            pl.BlockSpec((block_rows, D), lambda i: (i, 0)),  # Y tile
            pl.BlockSpec((1, D), lambda i: (0, 0)),           # std (resident)
            pl.BlockSpec((1, D), lambda i: (0, 0)),           # mean (resident)
        ],
        out_specs=pl.BlockSpec((block_rows, D), lambda i: (i, 0)),
        compiler_params=pltpu.CompilerParams(
            dimension_semantics=("parallel",),
            vmem_limit_bytes=vmem_limit,
        ),
    )(y_normed, std, mean)


if __name__ == "__main__":
    key = jax.random.PRNGKey(0)
    k1, k2, k3 = jax.random.split(key, 3)

    # 1) Small, aligned shapes: batch=8, out_features=256.
    B, D = 8, 256
    y_normed = jax.random.normal(k1, (B, D), dtype=jnp.float32)
    std = (0.5 + jax.random.uniform(k2, (1, D), dtype=jnp.float32)).astype(jnp.float32)
    mean = jax.random.normal(k3, (1, D), dtype=jnp.float32)

    out = jax.block_until_ready(base_model_predict(y_normed, std, mean))
    ref = jnp.maximum(y_normed * std + mean, 0.0)
    assert out.shape == (B, D)
    assert out.dtype == jnp.float32
    assert jnp.allclose(out, ref, atol=1e-6, rtol=1e-6)

    # 2) Ragged shapes, single block: exercises masked lane-tail stores
    #    (no pad / slice in the wrapper).
    B2, D2 = 10, 200
    y2 = jax.random.normal(k1, (B2, D2), dtype=jnp.float32)
    std2 = (0.5 + jax.random.uniform(k2, (1, D2), dtype=jnp.float32)).astype(jnp.float32)
    mean2 = jax.random.normal(k3, (1, D2), dtype=jnp.float32)

    out2 = jax.block_until_ready(base_model_predict(y2, std2, mean2))
    ref2 = jnp.maximum(y2 * std2 + mean2, 0.0)
    assert out2.shape == (B2, D2)
    assert jnp.allclose(out2, ref2, atol=1e-6, rtol=1e-6)

    # 3) Ragged rows with multiple grid steps + partial last row block
    #    (small target tile forces >1 step to exercise the masked row tail).
    B3, D3 = 300, 200
    y3 = jax.random.normal(k1, (B3, D3), dtype=jnp.float32)
    std3 = (0.5 + jax.random.uniform(k2, (1, D3), dtype=jnp.float32)).astype(jnp.float32)
    mean3 = jax.random.normal(k3, (1, D3), dtype=jnp.float32)

    out3 = jax.block_until_ready(
        base_model_predict(y3, std3, mean3, target_tile_bytes=64 << 10))
    ref3 = jnp.maximum(y3 * std3 + mean3, 0.0)
    assert out3.shape == (B3, D3)
    assert jnp.allclose(out3, ref3, atol=1e-6, rtol=1e-6)

    print("KERNEL_OK")
</pallas_src>

<mosaic_0001>
module attributes {stable_mosaic.version = 11 : i64} {
  func.func @_predict_kernel(%arg0: i32, %arg1: memref<8x256xf32, #tpu.memory_space<vmem>>, %arg2: memref<1x256xf32, #tpu.memory_space<vmem>>, %arg3: memref<1x256xf32, #tpu.memory_space<vmem>>, %arg4: memref<8x256xf32, #tpu.memory_space<vmem>>) attributes {dimension_semantics = [#tpu.dimension_semantics<parallel>], iteration_bounds = array<i64: 1>, scalar_prefetch = 0 : i64, scratch_operands = 0 : i64, tpu.core_type = #tpu.core_type<tc>, window_params = [{transform_indices = @transform_0, window_bounds = array<i64: 8, 256>}, {pipeline_mode = #tpu.pipeline_mode<synchronous>, transform_indices = @transform_1, window_bounds = array<i64: 1, 256>}, {pipeline_mode = #tpu.pipeline_mode<synchronous>, transform_indices = @transform_2, window_bounds = array<i64: 1, 256>}, {transform_indices = @transform_3, window_bounds = array<i64: 8, 256>}]} {
    %c0 = arith.constant 0 : index
    %c0_0 = arith.constant 0 : index
    %0 = vector.load %arg1[%c0, %c0_0] : memref<8x256xf32, #tpu.memory_space<vmem>>, vector<8x256xf32>
    %c0_1 = arith.constant 0 : index
    %c0_2 = arith.constant 0 : index
    %1 = vector.load %arg2[%c0_1, %c0_2] : memref<1x256xf32, #tpu.memory_space<vmem>>, vector<1x256xf32>
    %2 = vector.broadcast %1 : vector<1x256xf32> to vector<8x256xf32>
    %3 = arith.mulf %0, %2 : vector<8x256xf32>
    %c0_3 = arith.constant 0 : index
    %c0_4 = arith.constant 0 : index
    %4 = vector.load %arg3[%c0_3, %c0_4] : memref<1x256xf32, #tpu.memory_space<vmem>>, vector<1x256xf32>
    %5 = vector.broadcast %4 : vector<1x256xf32> to vector<8x256xf32>
    %6 = arith.addf %3, %5 : vector<8x256xf32>
    %cst = arith.constant 0.000000e+00 : f32
    %7 = vector.broadcast %cst : f32 to vector<8x256xf32>
    %8 = arith.maximumf %6, %7 : vector<8x256xf32>
    %c0_5 = arith.constant 0 : index
    %c0_6 = arith.constant 0 : index
    %9 = vector.load %arg4[%c0_5, %c0_6] : memref<8x256xf32, #tpu.memory_space<vmem>>, vector<8x256xf32>
    tpu.vector_store %arg4[%c0_5, %c0_6], %8 {strides = array<i32>} : memref<8x256xf32, #tpu.memory_space<vmem>>, vector<8x256xf32>,
    return
  }
  func.func @transform_0(%arg0: i32) -> (i32, i32) {
    %c0_i32 = arith.constant 0 : i32
    %c0_i32_0 = arith.constant 0 : i32
    return %arg0, %c0_i32 : i32, i32
  }
  func.func @transform_1(%arg0: i32) -> (i32, i32) {
    %c0_i32 = arith.constant 0 : i32
    %c0_i32_0 = arith.constant 0 : i32
    %c0_i32_1 = arith.constant 0 : i32
    return %c0_i32, %c0_i32_0 : i32, i32
  }
  func.func @transform_2(%arg0: i32) -> (i32, i32) {
    %c0_i32 = arith.constant 0 : i32
    %c0_i32_0 = arith.constant 0 : i32
    %c0_i32_1 = arith.constant 0 : i32
    return %c0_i32, %c0_i32_0 : i32, i32
  }
  func.func @transform_3(%arg0: i32) -> (i32, i32) {
    %c0_i32 = arith.constant 0 : i32
    %c0_i32_0 = arith.constant 0 : i32
    return %arg0, %c0_i32 : i32, i32
  }
}

</mosaic_0001>

<llo_original>
// kernel: tpu_custom_call.1
$region0: #{tpu_custom_call.1}
  #allocation0 [shape = 'u32[]', space=smem, size = 0x4, offset = 0x4, fixed_abs, tag = 'smem constant byte address 0x4 - core index']
  #allocation1 [shape = 'u32[144,128]{1,0:T(1,128)}', space=vmem, size = 0x12000, scoped, tag = 'internal scratch']
  %s0 = inlined_call_operand.hbm [shape: f32[8,256], index: 0, kind: input, shape index: {}]
  %s1 = inlined_call_operand.vmem [shape: f32[1,256], index: 1, kind: input, shape index: {}]
  %s2 = inlined_call_operand.vmem [shape: f32[1,256], index: 2, kind: input, shape index: {}]
  %s3 = inlined_call_operand.hbm [shape: f32[8,256], index: 3, kind: output, shape index: {}]
  %s4 = sld [smem:[#allocation0]]
  $region26: #{tpu_custom_call.1} parent=0
    _
  %s6 = ssub.s32 1, %s4
  %s7 = scalar_select 0, %s6, %s4
  $region1: #{tpu_custom_call.1} parent=0
    #allocation2 [shape = 'u8[8192]{0}', space=vmem, size = 0x2000, scoped, tag = 'input window, operand 0, single buffered']
    #allocation3 [shape = 's32[1]{0}', space=sflag, size = 0x4, scoped, tag = 'scoped memory for tpu_custom_call.1']
    #allocation4 [shape = 's32[1]{0}', space=sflag, size = 0x4, scoped, tag = 'scoped memory for tpu_custom_call.1']
    #allocation5 [shape = 'u8[8192]{0}', space=vmem, size = 0x2000, scoped, tag = 'output window, operand 0, single buffered']
    %8 = vsyncpa [#allocation3], 0
    %9 = vsyncpa [#allocation4], 0
    // Predicated region
    $region2: #{tpu_custom_call.1} parent=1 // pred_check
      _
    $region3: #{tpu_custom_call.1} parent=1 // pred_check_branch
      %11 = sbr.rel (0) target = $region5
    $region4: #{tpu_custom_call.1} parent=1 // pred_region
      %s13 = ssub.s32 256, 256
      %14 = vsyncadd [#allocation3], %s13
      %s16 = sshll.u32 [#allocation2], 4
      %s17 = int_to_ptr.vmem [resolvable:$true] %s16
      %19 = dma.hbm_to_vmem [thread:$0]  %s0, 256, %s17, [#allocation3]
    $region5: #{tpu_custom_call.1} parent=1 // pred_fallthru
      _
    // Predicated region
    $region6: #{tpu_custom_call.1} parent=1 // pred_check
      _
    $region7: #{tpu_custom_call.1} parent=1 // pred_check_branch
      %21 = sbr.rel (0) target = $region9
    $region8: #{tpu_custom_call.1} parent=1 // pred_region
      _
    $region9: #{tpu_custom_call.1} parent=1 // pred_fallthru
      _
    // Predicated region
    $region10: #{tpu_custom_call.1} parent=1 // pred_check
      _
    $region11: #{tpu_custom_call.1} parent=1 // pred_check_branch
      %23 = sbr.rel (0) target = $region13
    $region12: #{tpu_custom_call.1} parent=1 // pred_region
      _
    $region13: #{tpu_custom_call.1} parent=1 // pred_fallthru
      _
    // Predicated region
    $region14: #{tpu_custom_call.1} parent=1 // pred_check
      _
    $region15: #{tpu_custom_call.1} parent=1 // pred_check_branch
      %25 = sbr.rel (0) target = $region17
    $region16: #{tpu_custom_call.1} parent=1 // pred_region
      %26 = dma.done [#allocation3], 256
    $region17: #{tpu_custom_call.1} parent=1 // pred_fallthru
      _
    %v27 = vld [vmem:[#allocation2] sm:$0xff]
    %v28 = vld [vmem:[#allocation2 + $0x8] sm:$0xff]
    %v29 = vld [vmem:[%s1] sm:$0x3]
    %v31 = vlaneseq
    %v32 = vshrl.u32 %v31, 7
    %v33 = vsub.s32 0, %v32
    %v34 = vrot.slane %v29, %v33
    %v35 = vlaneseq
    %v36 = vshrl.u32 %v35, 7
    %v37 = vsub.s32 1, %v36
    %v38 = vrot.slane %v29, %v37
    %v41 = vmul.f32 %v27, %v34
    %v42 = vmul.f32 %v28, %v38
    %v43 = vld [vmem:[%s2] sm:$0x3]
    %v45 = vlaneseq
    %v46 = vshrl.u32 %v45, 7
    %v47 = vsub.s32 0, %v46
    %v48 = vrot.slane %v43, %v47
    %v49 = vlaneseq
    %v50 = vshrl.u32 %v49, 7
    %v51 = vsub.s32 1, %v50
    %v52 = vrot.slane %v43, %v51
    %v55 = vadd.f32 %v41, %v48
    %v56 = vadd.f32 %v42, %v52
    %v57 = vmax.f32 %v55, 0.0
    %v58 = vmax.f32 %v56, 0.0
    %59 = vst [vmem:[#allocation5] sm:$0xff] %v57
    %60 = vst [vmem:[#allocation5 + $0x8] sm:$0xff] %v58
    // Predicated region
    $region18: #{tpu_custom_call.1} parent=1 // pred_check
      _
    $region19: #{tpu_custom_call.1} parent=1 // pred_check_branch
      %62 = sbr.rel (0) target = $region21
    $region20: #{tpu_custom_call.1} parent=1 // pred_region
      %s64 = ssub.s32 256, 256
      %65 = vsyncadd [#allocation4], %s64
      %s67 = sshll.u32 [#allocation5], 4
      %s68 = int_to_ptr.vmem [resolvable:$true] %s67
      %70 = dma.vmem_to_hbm [thread:$0]  %s68, 256, %s3, [#allocation4]
    $region21: #{tpu_custom_call.1} parent=1 // pred_fallthru
      _
    // Predicated region
    $region22: #{tpu_custom_call.1} parent=1 // pred_check
      _
    $region23: #{tpu_custom_call.1} parent=1 // pred_check_branch
      %72 = sbr.rel (0) target = $region25
    $region24: #{tpu_custom_call.1} parent=1 // pred_region
      %73 = dma.done [#allocation4], 256
    $region25: #{tpu_custom_call.1} parent=1 // pred_fallthru
      _
    %74 = vsyncpa [#allocation3], 1
    %75 = vsyncpa [#allocation4], 1

</llo_original>
